<compile_context>
chip_gen: v5e
topology: v5e:2x2
jax: 0.10.0
libtpu: 0.0.40
codegen_flags: <defaults>
</compile_context>

<pallas_src>
import jax
import jax.numpy as jnp
from jax.experimental import pallas as pl
from jax.experimental.pallas import tpu as pltpu


def same_padding_for_conv3d(input_size, kernel_size, stride):
    # Faithful port of samePaddingForConv3d (integer // 2 semantics).
    _, d_in, h_in, w_in = input_size
    d_pad = ((d_in - 1) * stride[0] - d_in + (kernel_size[0] - 1) + 1) // 2
    h_pad = ((h_in - 1) * stride[1] - h_in + (kernel_size[1] - 1) + 1) // 2
    w_pad = ((w_in - 1) * stride[2] - w_in + (kernel_size[2] - 1) + 1) // 2
    return (d_pad, h_pad, w_pad)


def effective_weight(v, g):
    # nn.utils.weight_norm(..., name='weight', dim=0):
    #   weight = g * v / ||v||, norm per output channel over (Cin, KD, KH, KW).
    v = v.astype(jnp.float32)
    norm = jnp.sqrt(jnp.sum(v * v, axis=(1, 2, 3, 4), keepdims=True))
    return (g.astype(jnp.float32).reshape(-1, 1, 1, 1, 1) / norm) * v  # (Cout,Cin,KD,KH,KW)


def _fused_conv_relu_kernel(x_ref, w_ref, o_ref):
    # x_ref: (Kp, tile_m)   bf16 -- transposed im2col patches (+ ones row, zero pad)
    # w_ref: (Cout, Kp)     bf16 -- folded weight (+ bias column, zero pad)
    # o_ref: (Cout, tile_m) f32  -- transposed output tile (lane-dense stores)
    acc = jnp.dot(w_ref[...], x_ref[...], preferred_element_type=jnp.float32)
    o_ref[...] = jnp.maximum(acc, 0.0)  # fused ReLU (bias already inside the dot)


def _build_patches_t(x_bf16, kernel_size, padding, k_pad):
    """Transposed im2col: (k_pad, M) with rows = (tap, cin), plus a ones row."""
    N, Cin, D, H, W = x_bf16.shape
    KD, KH, KW = kernel_size
    pd, ph, pw = padding
    M = N * D * H * W
    xp = jnp.pad(x_bf16, ((0, 0), (0, 0), (pd, pd), (ph, ph), (pw, pw)))
    rows = []
    for a in range(KD):
        for b in range(KH):
            for c in range(KW):
                win = xp[:, :, a:a + D, b:b + H, c:c + W]          # (N,Cin,D,H,W)
                rows.append(jnp.transpose(win, (1, 0, 2, 3, 4)).reshape(Cin, M))
    k_real = KD * KH * KW * Cin
    rows.append(jnp.ones((1, M), x_bf16.dtype))                    # bias row
    if k_pad > k_real + 1:
        rows.append(jnp.zeros((k_pad - k_real - 1, M), x_bf16.dtype))
    return jnp.concatenate(rows, axis=0)                           # (k_pad, M)


def exp_conv3d(x_ncdhw, v, g, bias, kernel_size, padding, *, tile_m=512):
    N, Cin, D, H, W = x_ncdhw.shape
    KD, KH, KW = kernel_size
    Cout = v.shape[0]
    T = KD * KH * KW
    M = N * D * H * W
    k_real = T * Cin
    k_pad = ((k_real + 1 + 127) // 128) * 128      # bias row + MXU/sublane-aligned K

    # ---- weights: weight-norm, fold (taps, Cin) into K, append bias column ----
    w_eff = effective_weight(v, g)                                  # (Cout,Cin,KD,KH,KW)
    w_k = jnp.transpose(w_eff, (0, 2, 3, 4, 1)).reshape(Cout, k_real)
    w_full = jnp.concatenate(
        [w_k,
         bias.astype(jnp.float32).reshape(Cout, 1),
         jnp.zeros((Cout, k_pad - k_real - 1), jnp.float32)], axis=1)
    w_full = w_full.astype(jnp.bfloat16)                            # (Cout, k_pad)

    # ---- input: bf16 transposed patch matrix (wrapper-side data movement) ----
    x_t = _build_patches_t(x_ncdhw.astype(jnp.bfloat16), kernel_size, padding, k_pad)

    # ---- tiling over M (the lane dim of both x_t and the transposed output) ----
    assert M % 128 == 0, "demo shapes chosen so M is a multiple of 128"
    tm = max(128, (min(tile_m, M) // 128) * 128)
    while M % tm != 0:
        tm -= 128
    grid = (M // tm,)

    cost = pl.CostEstimate(
        flops=2 * M * k_real * Cout,
        transcendentals=0,
        bytes_accessed=int(x_t.size) * 2 + int(w_full.size) * 2 + M * Cout * 4)

    out_t = pl.pallas_call(
        _fused_conv_relu_kernel,
        out_shape=jax.ShapeDtypeStruct((Cout, M), jnp.float32),
        grid=grid,
        in_specs=[
            pl.BlockSpec((k_pad, tm), lambda i: (0, i)),    # patches tile
            pl.BlockSpec((Cout, k_pad), lambda i: (0, 0)),  # weight stays resident
        ],
        out_specs=pl.BlockSpec((Cout, tm), lambda i: (0, i)),
        compiler_params=pltpu.CompilerParams(
            dimension_semantics=("parallel",),
            vmem_limit_bytes=32 * 1024 * 1024),
        cost_estimate=cost,
    )(x_t, w_full)

    # (Cout, M) -> (N, Cout, D, H, W)  (matches PyTorch NCDHW output)
    return jnp.transpose(out_t.reshape(Cout, N, D, H, W), (1, 0, 2, 3, 4))


if __name__ == "__main__":
    # ExpConv3D(inputShape, numFilters=4, kernelSize=(3,3,3), expRate=2), stride 1.
    num_filters, exp_rate = 4, 2
    kernel_size = (3, 3, 3)
    N, Cin, D, H, W = 2, 4, 8, 16, 16
    Cout = num_filters * exp_rate
    padding = same_padding_for_conv3d((1, D, H, W), kernel_size, (1, 1, 1))  # (1,1,1)

    key = jax.random.PRNGKey(0)
    kx, kv, kg, kb = jax.random.split(key, 4)
    x = jax.random.normal(kx, (N, Cin, D, H, W), dtype=jnp.float32)
    v = jax.random.normal(kv, (Cout, Cin) + kernel_size, dtype=jnp.float32) * 0.1
    g = jax.random.uniform(kg, (Cout,), minval=0.5, maxval=1.5, dtype=jnp.float32)
    bias = jax.random.normal(kb, (Cout,), dtype=jnp.float32) * 0.1

    out = exp_conv3d(x, v, g, bias, kernel_size, padding)
    out = jax.block_until_ready(out)

    # Reference: f32 XLA 3-D conv + bias + ReLU with the same weight-norm weight.
    w_eff = effective_weight(v, g)
    ref = jax.lax.conv_general_dilated(
        x, w_eff, window_strides=(1, 1, 1),
        padding=[(p, p) for p in padding],
        dimension_numbers=("NCDHW", "OIDHW", "NCDHW"))
    ref = jnp.maximum(ref + bias[None, :, None, None, None], 0.0)

    assert out.shape == (N, Cout, D, H, W)
    err = float(jnp.max(jnp.abs(out - ref)))
    # bf16 inputs with f32 accumulation vs. an all-f32 reference -> loose tolerance.
    assert err < 5e-2, f"max abs error {err}"
    print("KERNEL_OK")
</pallas_src>

<mosaic_0001>
module attributes {stable_mosaic.version = 11 : i64} {
  func.func @_fused_conv_relu_kernel(%arg0: i32, %arg1: memref<128x512xbf16, #tpu.memory_space<vmem>>, %arg2: memref<8x128xbf16, #tpu.memory_space<vmem>>, %arg3: memref<8x512xf32, #tpu.memory_space<vmem>>) attributes {dimension_semantics = [#tpu.dimension_semantics<parallel>], iteration_bounds = array<i64: 8>, scalar_prefetch = 0 : i64, scratch_operands = 0 : i64, tpu.core_type = #tpu.core_type<tc>, window_params = [{transform_indices = @transform_0, window_bounds = array<i64: 128, 512>}, {pipeline_mode = #tpu.pipeline_mode<synchronous>, transform_indices = @transform_1, window_bounds = array<i64: 8, 128>}, {transform_indices = @transform_2, window_bounds = array<i64: 8, 512>}]} {
    %c0 = arith.constant 0 : index
    %c0_0 = arith.constant 0 : index
    %0 = vector.load %arg2[%c0, %c0_0] : memref<8x128xbf16, #tpu.memory_space<vmem>>, vector<8x128xbf16>
    %c0_1 = arith.constant 0 : index
    %c0_2 = arith.constant 0 : index
    %1 = vector.load %arg1[%c0_1, %c0_2] : memref<128x512xbf16, #tpu.memory_space<vmem>>, vector<128x512xbf16>
    %cst = arith.constant dense<0.000000e+00> : vector<8x512xf32>
    %2 = tpu.matmul %0, %1, %cst {dimension_numbers = #tpu.dot_dimension_numbers<[1], [0], [0], [1], [0, 0, 1, 1], [], []>} : vector<8x128xbf16>, vector<128x512xbf16>, vector<8x512xf32> -> vector<8x512xf32>
    %cst_3 = arith.constant 0.000000e+00 : f32
    %3 = vector.broadcast %cst_3 : f32 to vector<8x512xf32>
    %4 = arith.maximumf %2, %3 : vector<8x512xf32>
    %c0_4 = arith.constant 0 : index
    %c0_5 = arith.constant 0 : index
    %5 = vector.load %arg3[%c0_4, %c0_5] : memref<8x512xf32, #tpu.memory_space<vmem>>, vector<8x512xf32>
    tpu.vector_store %arg3[%c0_4, %c0_5], %4 {strides = array<i32>} : memref<8x512xf32, #tpu.memory_space<vmem>>, vector<8x512xf32>,
    return
  }
  func.func @transform_0(%arg0: i32) -> (i32, i32) {
    %c0_i32 = arith.constant 0 : i32
    %c0_i32_0 = arith.constant 0 : i32
    return %c0_i32, %arg0 : i32, i32
  }
  func.func @transform_1(%arg0: i32) -> (i32, i32) {
    %c0_i32 = arith.constant 0 : i32
    %c0_i32_0 = arith.constant 0 : i32
    %c0_i32_1 = arith.constant 0 : i32
    return %c0_i32, %c0_i32_0 : i32, i32
  }
  func.func @transform_2(%arg0: i32) -> (i32, i32) {
    %c0_i32 = arith.constant 0 : i32
    %c0_i32_0 = arith.constant 0 : i32
    return %c0_i32, %arg0 : i32, i32
  }
}

</mosaic_0001>

<llo_original>
// kernel: tpu_custom_call.1
$region0: #{tpu_custom_call.1}
  #allocation0 [shape = 'u32[]', space=smem, size = 0x4, offset = 0x4, fixed_abs, tag = 'smem constant byte address 0x4 - core index']
  #allocation1 [shape = 'u32[72,128]{1,0:T(1,128)}', space=vmem, size = 0x9000, scoped, tag = 'internal scratch']
  %s0 = inlined_call_operand.hbm [shape: bf16[128,4096], index: 0, kind: input, shape index: {}]
  %s1 = inlined_call_operand.hbm [shape: bf16[8,128], index: 1, kind: input, shape index: {}]
  %s2 = inlined_call_operand.hbm [shape: f32[8,4096], index: 2, kind: output, shape index: {}]
  %s3 = sld [smem:[#allocation0]]
  $region49: #{tpu_custom_call.1} parent=0
    _
  %s5 = ssub.s32 1, %s3
  %s6 = scalar_select 0, %s5, %s3
  $region1: #{tpu_custom_call.1} parent=0
    #allocation2 [shape = 'u8[262144]{0}', space=vmem, size = 0x40000, scoped, tag = 'input window, operand 0']
    #allocation3 [shape = 's32[2]{0}', space=sflag, size = 0x8, scoped, tag = 'scoped memory for tpu_custom_call.1']
    #allocation4 [shape = 's32[2]{0}', space=sflag, size = 0x8, scoped, tag = 'scoped memory for tpu_custom_call.1']
    #allocation5 [shape = 'u8[2048]{0}', space=vmem, size = 0x800, scoped, tag = 'input window, operand 1, single buffered']
    #allocation6 [shape = 's32[1]{0}', space=sflag, size = 0x4, scoped, tag = 'scoped memory for tpu_custom_call.1']
    #allocation7 [shape = 'u8[32768]{0}', space=vmem, size = 0x8000, scoped, tag = 'output window, operand 0']
    %7 = vsyncpa [#allocation3], 0
    %s8 = scalar_lea.sflag [#allocation3], 1
    %9 = vsyncpa %s8, 0
    %10 = vsyncpa [#allocation6], 0
    %11 = vsyncpa [#allocation4], 0
    %s12 = scalar_lea.sflag [#allocation4], 1
    %13 = vsyncpa %s12, 0
    loop: start=0, step=1, limit=10
    $region2: #{tpu_custom_call.1} parent=1 // loop_pre_header
      _
    $region3: #{tpu_custom_call.1} parent=1 // loop_header
      %s15 = sphi 0, %s19
      %p16 = scmp.ge.s32.totalorder %s15, 10
      %s25 = sphi 0, %s27
      %s28 = sphi 0, %s25
      %s29 = sphi 0, %s28
      %s45 = sphi 0, %s29
      %s49 = sphi 0, %s49
      %s51 = sphi 0, %s49
      %s52 = sphi 0, %s51
      %s66 = sphi 0, %s52
      %s72 = sphi 0, %s74
      %s75 = sphi 0, %s72
      %s76 = sphi 0, %s75
      %s92 = sphi 0, %s76
    $region4: #{tpu_custom_call.1} parent=1 // loop_header_branch
      %18 = sbr.rel (%p16) target = $region8
    $region5: #{tpu_custom_call.1} parent=1 // loop_body
      %s20 = ssub.s32 %s15, 1
      %s21 = ssub.s32 %s15, 2
      %s22 = sadd.s32 %s15, 1
      %s23 = ssub.s32 %s15, %s22
      %p24 = scmp.eq.s32.totalorder %s23, 0
      %s26 = sadd.s32 %s25, 1
      %s27 = scalar_select %p24, %s25, %s26
      %p30 = pneg %p24
      %p31 = scmp.eq.s32.totalorder %s15, 7
      %p32 = por %p30, %p31
      %p33 = scmp.ne.s32.totalorder %s25, %s28
      %p34 = scmp.eq.s32.totalorder %s15, 0
      %p35 = por %p33, %p34
      %p36 = scmp.ne.s32.totalorder %s25, %s28
      %p37 = scmp.eq.s32.totalorder %s20, 7
      %p38 = por %p36, %p37
      %p39 = scmp.ne.s32.totalorder %s28, %s29
      %p40 = scmp.eq.s32.totalorder %s20, 0
      %p41 = por %p39, %p40
      %p42 = scmp.ne.s32.totalorder %s28, %s29
      %p43 = scmp.eq.s32.totalorder %s21, 7
      %p44 = por %p42, %p43
      %p46 = scmp.ne.s32.totalorder %s29, %s45
      %p47 = scmp.eq.s32.totalorder %s21, 0
      %p48 = por %p46, %p47
      %s50 = sadd.s32 %s49, 1
      %p53 = scmp.eq.s32.totalorder %s15, 7
      %p54 = scmp.ne.s32.totalorder %s49, %s51
      %p55 = scmp.eq.s32.totalorder %s15, 0
      %p56 = por %p54, %p55
      %p57 = scmp.ne.s32.totalorder %s49, %s51
      %p58 = scmp.eq.s32.totalorder %s20, 7
      %p59 = por %p57, %p58
      %p60 = scmp.ne.s32.totalorder %s51, %s52
      %p61 = scmp.eq.s32.totalorder %s20, 0
      %p62 = por %p60, %p61
      %p63 = scmp.ne.s32.totalorder %s51, %s52
      %p64 = scmp.eq.s32.totalorder %s21, 7
      %p65 = por %p63, %p64
      %p67 = scmp.ne.s32.totalorder %s52, %s66
      %p68 = scmp.eq.s32.totalorder %s21, 0
      %p69 = por %p67, %p68
      %s70 = ssub.s32 %s15, %s22
      %p71 = scmp.eq.s32.totalorder %s70, 0
      %s73 = sadd.s32 %s72, 1
      %s74 = scalar_select %p71, %s72, %s73
      %p77 = pneg %p71
      %p78 = scmp.eq.s32.totalorder %s15, 7
      %p79 = por %p77, %p78
      %p80 = scmp.ne.s32.totalorder %s72, %s75
      %p81 = scmp.eq.s32.totalorder %s15, 0
      %p82 = por %p80, %p81
      %p83 = scmp.ne.s32.totalorder %s72, %s75
      %p84 = scmp.eq.s32.totalorder %s20, 7
      %p85 = por %p83, %p84
      %p86 = scmp.ne.s32.totalorder %s75, %s76
      %p87 = scmp.eq.s32.totalorder %s20, 0
      %p88 = por %p86, %p87
      %p89 = scmp.ne.s32.totalorder %s75, %s76
      %p90 = scmp.eq.s32.totalorder %s21, 7
      %p91 = por %p89, %p90
      %p93 = scmp.ne.s32.totalorder %s76, %s92
      %p94 = scmp.eq.s32.totalorder %s21, 0
      %p95 = por %p93, %p94
      %p96 = scmp.le.s32.totalorder 1, %s15
      %p97 = scmp.lt.s32.totalorder %s15, 9
      %p98 = pnand %p96, %p97
      %p99 = pneg %p98
      // Predicated region
      $region9: #{tpu_custom_call.1} parent=5 // pred_check
        _
      $region10: #{tpu_custom_call.1} parent=5 // pred_check_branch
        %101 = sbr.rel (%p98) target = $region12
      $region11: #{tpu_custom_call.1} parent=5 // pred_region
        %s102 = ssub.s32 %s15, 1
        // Predicated region
        $region13: #{tpu_custom_call.1} parent=11 // pred_check
          %p103 = pneg %p62
        $region14: #{tpu_custom_call.1} parent=11 // pred_check_branch
          %105 = sbr.rel (%p103) target = $region16
        $region15: #{tpu_custom_call.1} parent=11 // pred_region
          %107 = vsyncadd [#allocation6], 0
          %s109 = sshll.u32 %s1, 4
          %s110 = int_to_ptr.hbm [resolvable:$true] %s109
          %s111 = sshll.u32 [#allocation5], 4
          %s112 = int_to_ptr.vmem [resolvable:$true] %s111
          %114 = dma.hbm_to_vmem [thread:$0]  %s110, 64, %s112, [#allocation6]
        $region16: #{tpu_custom_call.1} parent=11 // pred_fallthru
          _
      $region12: #{tpu_custom_call.1} parent=5 // pred_fallthru
        _
      %p115 = scmp.lt.s32.totalorder %s15, 8
      // Predicated region
      $region17: #{tpu_custom_call.1} parent=5 // pred_check
        %p116 = pneg %p115
      $region18: #{tpu_custom_call.1} parent=5 // pred_check_branch
        %118 = sbr.rel (%p116) target = $region20
      $region19: #{tpu_custom_call.1} parent=5 // pred_region
        // Predicated region
        $region21: #{tpu_custom_call.1} parent=19 // pred_check
          %p119 = pneg %p35
        $region22: #{tpu_custom_call.1} parent=19 // pred_check_branch
          %121 = sbr.rel (%p119) target = $region24
        $region23: #{tpu_custom_call.1} parent=19 // pred_region
          %s122 = sand.u32 %s25, 1
          %s123 = scalar_lea.sflag [#allocation3], %s122
          %s124 = sand.u32 %s25, 1
          %s125 = smul.addr %s124, 256
          %s126 = scalar_lea.vmem [#allocation2], %s125
          %s127 = smul.u32 4, %s15
          %129 = vsyncadd %s123, 0
          %s130 = smul.addr %s127, 4
          %s131 = scalar_lea.hbm %s0, %s130
          %s132 = sshll.u32 %s131, 4
          %s133 = int_to_ptr.hbm [resolvable:$true] %s132
          %s134 = sshll.u32 %s126, 4
          %s135 = int_to_ptr.vmem [resolvable:$true] %s134
          %140 = dma.hbm_to_vmem [thread:$0]  %s133, 4096, %s135, %s123, 2048, 256, 16
        $region24: #{tpu_custom_call.1} parent=19 // pred_fallthru
          _
      $region20: #{tpu_custom_call.1} parent=5 // pred_fallthru
        _
      %p141 = scmp.le.s32.totalorder 1, %s15
      %p142 = scmp.lt.s32.totalorder %s15, 9
      %p143 = pnand %p141, %p142
      %p144 = pneg %p143
      // Predicated region
      $region25: #{tpu_custom_call.1} parent=5 // pred_check
        _
      $region26: #{tpu_custom_call.1} parent=5 // pred_check_branch
        %146 = sbr.rel (%p143) target = $region28
      $region27: #{tpu_custom_call.1} parent=5 // pred_region
        %s147 = ssub.s32 %s15, 1
        %s148 = sand.u32 %s28, 1
        %s149 = scalar_lea.sflag [#allocation3], %s148
        %s150 = sand.u32 %s28, 1
        %s151 = smul.addr %s150, 256
        %s152 = scalar_lea.vmem [#allocation2], %s151
        // Predicated region
        $region29: #{tpu_custom_call.1} parent=27 // pred_check
          %p153 = pneg %p41
        $region30: #{tpu_custom_call.1} parent=27 // pred_check_branch
          %155 = sbr.rel (%p153) target = $region32
        $region31: #{tpu_custom_call.1} parent=27 // pred_region
          %157 = dma.done %s149, 4096
        $region32: #{tpu_custom_call.1} parent=27 // pred_fallthru
          _
        // Predicated region
        $region33: #{tpu_custom_call.1} parent=27 // pred_check
          %p158 = pneg %p62
        $region34: #{tpu_custom_call.1} parent=27 // pred_check_branch
          %160 = sbr.rel (%p158) target = $region36
        $region35: #{tpu_custom_call.1} parent=27 // pred_region
          %162 = dma.done [#allocation6], 64
        $region36: #{tpu_custom_call.1} parent=27 // pred_fallthru
          _
        %s163 = sand.u32 %s28, 1
        %s164 = scalar_lea.sflag [#allocation3], %s163
        %s165 = sand.u32 %s28, 1
        %s166 = smul.addr %s165, 256
        %s167 = scalar_lea.vmem [#allocation2], %s166
        %p168 = pneg %p41
        %p169 = pneg %p38
        %p170 = pneg %p62
        %p171 = pneg %p59
        %p172 = pneg %p88
        %p173 = pneg %p85
        %s174 = sand.u32 %s75, 1
        %s175 = scalar_lea.sflag [#allocation4], %s174
        %s176 = sand.u32 %s75, 1
        %s177 = smul.addr %s176, 32
        %s178 = scalar_lea.vmem [#allocation7], %s177
        %s179 = smul.u32 4, %s20
        %s180 = smul.u32 4, %s20
        %v181 = vld [vmem:[#allocation5] sm:$0xf]
        %v182 = vld [vmem:[%s152] sm:$0xff]
        %v183 = vld [vmem:[%s152 + $0x8] sm:$0xff]
        %v184 = vld [vmem:[%s152 + $0x10] sm:$0xff]
        %v185 = vld [vmem:[%s152 + $0x18] sm:$0xff]
        %v186 = vld [vmem:[%s152 + $0x20] sm:$0xff]
        %v187 = vld [vmem:[%s152 + $0x28] sm:$0xff]
        %v188 = vld [vmem:[%s152 + $0x30] sm:$0xff]
        %v189 = vld [vmem:[%s152 + $0x38] sm:$0xff]
        %v190 = vld [vmem:[%s152 + $0x40] sm:$0xff]
        %v191 = vld [vmem:[%s152 + $0x48] sm:$0xff]
        %v192 = vld [vmem:[%s152 + $0x50] sm:$0xff]
        %v193 = vld [vmem:[%s152 + $0x58] sm:$0xff]
        %v194 = vld [vmem:[%s152 + $0x60] sm:$0xff]
        %v195 = vld [vmem:[%s152 + $0x68] sm:$0xff]
        %v196 = vld [vmem:[%s152 + $0x70] sm:$0xff]
        %v197 = vld [vmem:[%s152 + $0x78] sm:$0xff]
        %v198 = vld [vmem:[%s152 + $0x80] sm:$0xff]
        %v199 = vld [vmem:[%s152 + $0x88] sm:$0xff]
        %v200 = vld [vmem:[%s152 + $0x90] sm:$0xff]
        %v201 = vld [vmem:[%s152 + $0x98] sm:$0xff]
        %v202 = vld [vmem:[%s152 + $0xa0] sm:$0xff]
        %v203 = vld [vmem:[%s152 + $0xa8] sm:$0xff]
        %v204 = vld [vmem:[%s152 + $0xb0] sm:$0xff]
        %v205 = vld [vmem:[%s152 + $0xb8] sm:$0xff]
        %v206 = vld [vmem:[%s152 + $0xc0] sm:$0xff]
        %v207 = vld [vmem:[%s152 + $0xc8] sm:$0xff]
        %v208 = vld [vmem:[%s152 + $0xd0] sm:$0xff]
        %v209 = vld [vmem:[%s152 + $0xd8] sm:$0xff]
        %v210 = vld [vmem:[%s152 + $0xe0] sm:$0xff]
        %v211 = vld [vmem:[%s152 + $0xe8] sm:$0xff]
        %v212 = vld [vmem:[%s152 + $0xf0] sm:$0xff]
        %v213 = vld [vmem:[%s152 + $0xf8] sm:$0xff]
        %v246 = vunpack.c.l.b16 %v182
        %v247 = vunpack.c.h.b16 %v182
        %v248 = vunpack.c.l.b16 %v183
        %v249 = vunpack.c.h.b16 %v183
        %v250 = vunpack.c.l.b16 %v184
        %v251 = vunpack.c.h.b16 %v184
        %v252 = vunpack.c.l.b16 %v185
        %v253 = vunpack.c.h.b16 %v185
        %v254 = vunpack.c.l.b16 %v186
        %v255 = vunpack.c.h.b16 %v186
        %v256 = vunpack.c.l.b16 %v187
        %v257 = vunpack.c.h.b16 %v187
        %v258 = vunpack.c.l.b16 %v188
        %v259 = vunpack.c.h.b16 %v188
        %v260 = vunpack.c.l.b16 %v189
        %v261 = vunpack.c.h.b16 %v189
        %v262 = vunpack.c.l.b16 %v190
        %v263 = vunpack.c.h.b16 %v190
        %v264 = vunpack.c.l.b16 %v191
        %v265 = vunpack.c.h.b16 %v191
        %v266 = vunpack.c.l.b16 %v192
        %v267 = vunpack.c.h.b16 %v192
        %v268 = vunpack.c.l.b16 %v193
        %v269 = vunpack.c.h.b16 %v193
        %v270 = vunpack.c.l.b16 %v194
        %v271 = vunpack.c.h.b16 %v194
        %v272 = vunpack.c.l.b16 %v195
        %v273 = vunpack.c.h.b16 %v195
        %v274 = vunpack.c.l.b16 %v196
        %v275 = vunpack.c.h.b16 %v196
        %v276 = vunpack.c.l.b16 %v197
        %v277 = vunpack.c.h.b16 %v197
        %v278 = vunpack.c.l.b16 %v198
        %v279 = vunpack.c.h.b16 %v198
        %v280 = vunpack.c.l.b16 %v199
        %v281 = vunpack.c.h.b16 %v199
        %v282 = vunpack.c.l.b16 %v200
        %v283 = vunpack.c.h.b16 %v200
        %v284 = vunpack.c.l.b16 %v201
        %v285 = vunpack.c.h.b16 %v201
        %v286 = vunpack.c.l.b16 %v202
        %v287 = vunpack.c.h.b16 %v202
        %v288 = vunpack.c.l.b16 %v203
        %v289 = vunpack.c.h.b16 %v203
        %v290 = vunpack.c.l.b16 %v204
        %v291 = vunpack.c.h.b16 %v204
        %v292 = vunpack.c.l.b16 %v205
        %v293 = vunpack.c.h.b16 %v205
        %v294 = vunpack.c.l.b16 %v206
        %v295 = vunpack.c.h.b16 %v206
        %v296 = vunpack.c.l.b16 %v207
        %v297 = vunpack.c.h.b16 %v207
        %v298 = vunpack.c.l.b16 %v208
        %v299 = vunpack.c.h.b16 %v208
        %v300 = vunpack.c.l.b16 %v209
        %v301 = vunpack.c.h.b16 %v209
        %v302 = vunpack.c.l.b16 %v210
        %v303 = vunpack.c.h.b16 %v210
        %v304 = vunpack.c.l.b16 %v211
        %v305 = vunpack.c.h.b16 %v211
        %v306 = vunpack.c.l.b16 %v212
        %v307 = vunpack.c.h.b16 %v212
        %v308 = vunpack.c.l.b16 %v213
        %v309 = vunpack.c.h.b16 %v213
        %v310 = vpack.c.b16 %v250, %v246
        %v311 = vpack.c.b16 %v251, %v247
        %v312 = vpack.c.b16 %v252, %v248
        %v313 = vpack.c.b16 %v253, %v249
        %v314 = vpack.c.b16 %v258, %v254
        %v315 = vpack.c.b16 %v259, %v255
        %v316 = vpack.c.b16 %v260, %v256
        %v317 = vpack.c.b16 %v261, %v257
        %v318 = vpack.c.b16 %v266, %v262
        %v319 = vpack.c.b16 %v267, %v263
        %v320 = vpack.c.b16 %v268, %v264
        %v321 = vpack.c.b16 %v269, %v265
        %v322 = vpack.c.b16 %v274, %v270
        %v323 = vpack.c.b16 %v275, %v271
        %v324 = vpack.c.b16 %v276, %v272
        %v325 = vpack.c.b16 %v277, %v273
        %v326 = vpack.c.b16 %v282, %v278
        %v327 = vpack.c.b16 %v283, %v279
        %v328 = vpack.c.b16 %v284, %v280
        %v329 = vpack.c.b16 %v285, %v281
        %v330 = vpack.c.b16 %v290, %v286
        %v331 = vpack.c.b16 %v291, %v287
        %v332 = vpack.c.b16 %v292, %v288
        %v333 = vpack.c.b16 %v293, %v289
        %v334 = vpack.c.b16 %v298, %v294
        %v335 = vpack.c.b16 %v299, %v295
        %v336 = vpack.c.b16 %v300, %v296
        %v337 = vpack.c.b16 %v301, %v297
        %v338 = vpack.c.b16 %v306, %v302
        %v339 = vpack.c.b16 %v307, %v303
        %v340 = vpack.c.b16 %v308, %v304
        %v341 = vpack.c.b16 %v309, %v305
        %374 = vmatpush.bf16.msra.mxu0 %v338
        %375 = vmatpush.bf16.msra.mxu0 %v334
        %376 = vmatpush.bf16.msra.mxu0 %v330
        %377 = vmatpush.bf16.msra.mxu0 %v326
        %378 = vmatpush.bf16.msra.mxu0 %v322
        %379 = vmatpush.bf16.msra.mxu0 %v318
        %380 = vmatpush.bf16.msra.mxu0 %v314
        %381 = vmatpush.bf16.msra.mxu0 %v310
        %382 = vmatmul.bf16.gmra.mxu0 %v181
        %v383 = vpop.f32.mrf.mxu0
        %v384 = vadd.f32 0.0, %v383
        %v385 = vpop.f32.mrf.mxu0
        %386 = vdwg.mxu0
        %387 = vmatpush.bf16.msra.mxu0 %v339
        %388 = vmatpush.bf16.msra.mxu0 %v335
        %389 = vmatpush.bf16.msra.mxu0 %v331
        %390 = vmatpush.bf16.msra.mxu0 %v327
        %391 = vmatpush.bf16.msra.mxu0 %v323
        %392 = vmatpush.bf16.msra.mxu0 %v319
        %393 = vmatpush.bf16.msra.mxu0 %v315
        %394 = vmatpush.bf16.msra.mxu0 %v311
        %395 = vmatmul.bf16.gmra.mxu0 %v181
        %v396 = vpop.f32.mrf.mxu0
        %v397 = vadd.f32 0.0, %v396
        %v398 = vpop.f32.mrf.mxu0
        %399 = vdwg.mxu0
        %400 = vmatpush.bf16.msra.mxu0 %v340
        %401 = vmatpush.bf16.msra.mxu0 %v336
        %402 = vmatpush.bf16.msra.mxu0 %v332
        %403 = vmatpush.bf16.msra.mxu0 %v328
        %404 = vmatpush.bf16.msra.mxu0 %v324
        %405 = vmatpush.bf16.msra.mxu0 %v320
        %406 = vmatpush.bf16.msra.mxu0 %v316
        %407 = vmatpush.bf16.msra.mxu0 %v312
        %408 = vmatmul.bf16.gmra.mxu0 %v181
        %v409 = vpop.f32.mrf.mxu0
        %v410 = vadd.f32 0.0, %v409
        %v411 = vpop.f32.mrf.mxu0
        %412 = vdwg.mxu0
        %413 = vmatpush.bf16.msra.mxu0 %v341
        %414 = vmatpush.bf16.msra.mxu0 %v337
        %415 = vmatpush.bf16.msra.mxu0 %v333
        %416 = vmatpush.bf16.msra.mxu0 %v329
        %417 = vmatpush.bf16.msra.mxu0 %v325
        %418 = vmatpush.bf16.msra.mxu0 %v321
        %419 = vmatpush.bf16.msra.mxu0 %v317
        %420 = vmatpush.bf16.msra.mxu0 %v313
        %421 = vmatmul.bf16.gmra.mxu0 %v181
        %v422 = vpop.f32.mrf.mxu0
        %v423 = vadd.f32 0.0, %v422
        %v424 = vpop.f32.mrf.mxu0
        %425 = vdwg.mxu0
        %v426 = vmax.f32 %v384, 0.0
        %v427 = vmax.f32 %v397, 0.0
        %v428 = vmax.f32 %v410, 0.0
        %v429 = vmax.f32 %v423, 0.0
        %430 = vst [vmem:[%s178] sm:$0xff] %v426
        %431 = vst [vmem:[%s178 + $0x8] sm:$0xff] %v427
        %432 = vst [vmem:[%s178 + $0x10] sm:$0xff] %v428
        %433 = vst [vmem:[%s178 + $0x18] sm:$0xff] %v429
        %s434 = sand.u32 %s75, 1
        %s435 = scalar_lea.sflag [#allocation4], %s434
        %s436 = sand.u32 %s75, 1
        %s437 = smul.addr %s436, 32
        %s438 = scalar_lea.vmem [#allocation7], %s437
        // Predicated region
        $region37: #{tpu_custom_call.1} parent=27 // pred_check
          %p439 = pneg %p85
        $region38: #{tpu_custom_call.1} parent=27 // pred_check_branch
          %441 = sbr.rel (%p439) target = $region40
        $region39: #{tpu_custom_call.1} parent=27 // pred_region
          %s442 = smul.u32 4, %s20
          %444 = vsyncadd %s435, 0
          %s445 = smul.addr %s442, 8
          %s446 = scalar_lea.hbm %s2, %s445
          %s448 = sshll.u32 %s438, 4
          %s449 = int_to_ptr.vmem [resolvable:$true] %s448
          %s450 = sshll.u32 %s446, 4
          %s451 = int_to_ptr.hbm [resolvable:$true] %s450
          %453 = dma.vmem_to_hbm [thread:$0]  %s449, 512, %s451, %s435
        $region40: #{tpu_custom_call.1} parent=27 // pred_fallthru
          _
      $region28: #{tpu_custom_call.1} parent=5 // pred_fallthru
        _
      %p454 = scmp.le.s32.totalorder 2, %s15
      // Predicated region
      $region41: #{tpu_custom_call.1} parent=5 // pred_check
        %p455 = pneg %p454
      $region42: #{tpu_custom_call.1} parent=5 // pred_check_branch
        %457 = sbr.rel (%p455) target = $region44
      $region43: #{tpu_custom_call.1} parent=5 // pred_region
        %s458 = ssub.s32 %s15, 2
        // Predicated region
        $region45: #{tpu_custom_call.1} parent=43 // pred_check
          %p459 = pneg %p91
        $region46: #{tpu_custom_call.1} parent=43 // pred_check_branch
          %461 = sbr.rel (%p459) target = $region48
        $region47: #{tpu_custom_call.1} parent=43 // pred_region
          %s462 = sand.u32 %s76, 1
          %s463 = scalar_lea.sflag [#allocation4], %s462
          %s464 = sand.u32 %s76, 1
          %s465 = smul.addr %s464, 32
          %s466 = scalar_lea.vmem [#allocation7], %s465
          %468 = dma.done %s463, 512
        $region48: #{tpu_custom_call.1} parent=43 // pred_fallthru
          _
      $region44: #{tpu_custom_call.1} parent=5 // pred_fallthru
        _
    $region6: #{tpu_custom_call.1} parent=1 // loop_footer
      %s19 = sadd.s32 1, %s15
    $region7: #{tpu_custom_call.1} parent=1 // loop_footer_branch
      %14 = sbr.rel target = $region3
    $region8: #{tpu_custom_call.1} parent=1 // loop_exit
      _
    %469 = vsyncpa [#allocation3], 1
    %s470 = scalar_lea.sflag [#allocation3], 1
    %471 = vsyncpa %s470, 1
    %472 = vsyncpa [#allocation6], 1
    %473 = vsyncpa [#allocation4], 1
    %s474 = scalar_lea.sflag [#allocation4], 1
    %475 = vsyncpa %s474, 1

</llo_original>
